<compile_context>
chip_gen: v5e
topology: v5e:2x2
jax: 0.10.0
libtpu: 0.0.40
codegen_flags: <defaults>
</compile_context>

<pallas_src>
import functools

import jax
import jax.numpy as jnp
from jax.experimental import pallas as pl
from jax.experimental.pallas import tpu as pltpu


def _round_up(x, m):
    return ((x + m - 1) // m) * m


def _pick_tile(dim, max_tile, align):
    """`dim` is a multiple of `align`; return the largest multiple of `align`
    that divides `dim` and is <= max_tile (falls back to `align`)."""
    if dim <= max_tile:
        return dim
    best = align
    t = align
    while t <= max_tile:
        if dim % t == 0:
            best = t
        t += align
    return best


# ---------------------------------------------------------------------------
# Fast path: whole problem fits comfortably in VMEM.  Single invocation,
# no grid, no accumulator, no phase pl.when's.
# ---------------------------------------------------------------------------
def _linear_single_block_kernel(x_ref, w_ref, b_ref, o_ref):
    xv = x_ref[...]
    wv = w_ref[...]
    if xv.dtype != wv.dtype:
        xv = xv.astype(wv.dtype)          # bf16 weight -> bf16 MXU, f32 acc
    o_ref[...] = (
        jnp.dot(xv, wv, preferred_element_type=jnp.float32)
        + b_ref[...].astype(jnp.float32)
    ).astype(o_ref.dtype)


# ---------------------------------------------------------------------------
# General path (f32 output): accumulate directly into the resident output
# block (its index map is independent of k), bias-seeded at k == 0.
# ---------------------------------------------------------------------------
def _linear_tiled_kernel_f32out(x_ref, w_ref, b_ref, o_ref):
    k = pl.program_id(2)

    @pl.when(k == 0)
    def _():
        o_ref[...] = jnp.broadcast_to(
            b_ref[...].astype(jnp.float32), o_ref.shape
        )

    xv = x_ref[...]
    wv = w_ref[...]
    if xv.dtype != wv.dtype:
        xv = xv.astype(wv.dtype)
    o_ref[...] += jnp.dot(xv, wv, preferred_element_type=jnp.float32)


# ---------------------------------------------------------------------------
# General path (non-f32 output): f32 scratch accumulator + cast epilogue.
# ---------------------------------------------------------------------------
def _linear_tiled_kernel_acc(x_ref, w_ref, b_ref, o_ref, acc_ref):
    k = pl.program_id(2)

    @pl.when(k == 0)
    def _():
        acc_ref[...] = jnp.broadcast_to(
            b_ref[...].astype(jnp.float32), acc_ref.shape
        )

    xv = x_ref[...]
    wv = w_ref[...]
    if xv.dtype != wv.dtype:
        xv = xv.astype(wv.dtype)
    acc_ref[...] += jnp.dot(xv, wv, preferred_element_type=jnp.float32)

    @pl.when(k == pl.num_programs(2) - 1)
    def _():
        o_ref[...] = acc_ref[...].astype(o_ref.dtype)


@functools.partial(
    jax.jit,
    static_argnames=("out_features", "tm", "tn", "tk", "single_block"),
)
def linear_pallas(x, w, b, *, out_features=None, tm=512, tn=512, tk=512,
                  single_block=None):
    """Computes x @ w + b on TPU via Pallas.

    x: (M, K); w: (K', N) weight stored K-major (K' >= K allowed if the extra
    rows are zero padding); b: (N,).  Returns (M, out_features).
    """
    M, K = x.shape
    Kw, N = w.shape
    assert b.shape == (N,)
    if out_features is None:
        out_features = N
    out_dtype = x.dtype

    # --- align to hardware granularity (no-op when pre-padded at init) ------
    Kp = _round_up(max(K, Kw), 128)   # K: last dim of x / 2nd-last of w
    Np = _round_up(N, 128)            # N: last dim of w / out
    if (Kw, N) != (Kp, Np):
        w = jnp.pad(w, ((0, Kp - Kw), (0, Np - N)))
        b = jnp.pad(b, (0, Np - N))
    if K != Kp:
        x = jnp.pad(x, ((0, 0), (0, Kp - K)))

    if single_block is None:
        # Tiny problem (like the shipped 8x256x128 case): everything fits in
        # VMEM many times over -> single-block kernel beats any grid (each
        # grid step costs ~0.35 us of pure overhead).  Conservative 4 MiB
        # threshold keeps us far under even v5e's 16 MiB default scoped VMEM.
        total_bytes = (M * Kp * x.dtype.itemsize
                       + Kp * Np * w.dtype.itemsize
                       + M * Np * jnp.dtype(out_dtype).itemsize
                       + Np * 4)
        single_block = total_bytes <= (4 << 20)

    if single_block:
        out = pl.pallas_call(
            _linear_single_block_kernel,
            out_shape=jax.ShapeDtypeStruct((M, Np), out_dtype),
        )(x, w, b.reshape(1, Np))
        if Np != out_features:
            out = out[:, :out_features]
        return out

    # ---------------- tiled path ----------------
    Mp = _round_up(M, 8)
    if Mp != M:
        x = jnp.pad(x, ((0, Mp - M), (0, 0)))

    # Tiles that exactly divide the (8,128)-aligned problem -> no wasted work.
    tm = _pick_tile(Mp, tm, 8)
    tn = _pick_tile(Np, tn, 128)
    tk = _pick_tile(Kp, tk, 128)

    # Megacore (v7x has 2 TCs): make sure the "parallel" i/j axes have >= 2
    # blocks when the shape allows it, so both cores get work.
    if (Mp // tm) * (Np // tn) == 1:
        if Np >= 256:
            tn = _pick_tile(Np, max(Np // 2, 128), 128)
        elif Mp >= 16:
            tm = _pick_tile(Mp, max(Mp // 2, 8), 8)

    grid = (Mp // tm, Np // tn, Kp // tk)

    if out_dtype == jnp.float32:
        kernel = _linear_tiled_kernel_f32out
        scratch = []
        acc_bytes = 0
    else:
        kernel = _linear_tiled_kernel_acc
        scratch = [pltpu.VMEM((tm, tn), jnp.float32)]
        acc_bytes = tm * tn * 4

    # Double-buffered footprint estimate; raise the scoped-VMEM limit enough
    # to cover it (v5e default is only 16 MiB) but stay well inside v7x's
    # 64 MiB physical VMEM.
    vmem_bytes = (2 * tm * tk * x.dtype.itemsize
                  + 2 * tk * tn * w.dtype.itemsize
                  + 2 * tm * tn * jnp.dtype(out_dtype).itemsize
                  + 2 * tn * 4
                  + acc_bytes)
    vmem_limit = min(max(2 * vmem_bytes, 32 << 20), 56 << 20)

    out = pl.pallas_call(
        kernel,
        out_shape=jax.ShapeDtypeStruct((Mp, Np), out_dtype),
        grid_spec=pltpu.PrefetchScalarGridSpec(
            num_scalar_prefetch=0,
            grid=grid,
            in_specs=[
                pl.BlockSpec((tm, tk), lambda i, j, k: (i, k)),   # x tile
                pl.BlockSpec((tk, tn), lambda i, j, k: (k, j)),   # w tile
                pl.BlockSpec((1, tn), lambda i, j, k: (0, j)),    # bias tile
            ],
            out_specs=pl.BlockSpec((tm, tn), lambda i, j, k: (i, j)),
            scratch_shapes=scratch,
        ),
        compiler_params=pltpu.CompilerParams(
            dimension_semantics=("parallel", "parallel", "arbitrary"),
            vmem_limit_bytes=vmem_limit,
        ),
    )(x, w, b.reshape(1, Np))

    if (Mp, Np) != (M, out_features):
        out = out[:M, :out_features]
    return out


class EncoderShowAndTellRevisePallas:
    """JAX/Pallas port of Encoder_ShowAndTellRevise (a single nn.Linear)."""

    def __init__(self, input_size, output_size, key,
                 weight_dtype=jnp.bfloat16):
        self.input_size = input_size
        self.output_size = output_size
        kw, kb = jax.random.split(key)
        # PyTorch nn.Linear default init: U(-1/sqrt(in), 1/sqrt(in))
        bound = 1.0 / (input_size ** 0.5)
        # PyTorch layout (out, in) kept only for reference checks.
        self.weight = jax.random.uniform(
            kw, (output_size, input_size), jnp.float32, -bound, bound
        )
        self.bias = jax.random.uniform(
            kb, (output_size,), jnp.float32, -bound, bound
        )
        # Kernel-side weight: transposed, cast to bf16 and padded to the
        # (…,128) hardware granularity ONCE at init (no per-call .T / pad /
        # cast -> no per-forward HBM copy of the weight).
        self.padded_k = _round_up(input_size, 128)
        self.padded_n = _round_up(output_size, 128)
        w_t = self.weight.T.astype(weight_dtype)            # (in, out)
        self.weight_t_padded = jnp.pad(
            w_t,
            ((0, self.padded_k - input_size), (0, self.padded_n - output_size)),
        )
        self.bias_padded = jnp.pad(
            self.bias, (0, self.padded_n - output_size)
        )

    def __call__(self, x):
        # x: (..., input_size) -> (..., output_size).  Flatten leading dims so
        # M is as large as possible (amortise per-call / DMA-setup overhead).
        lead = x.shape[:-1]
        x2 = x.reshape(-1, self.input_size)
        if self.padded_k != self.input_size:
            # Zero-pad K to match the pre-padded weight (zeros add nothing).
            x2 = jnp.pad(x2, ((0, 0), (0, self.padded_k - self.input_size)))
        out = linear_pallas(
            x2, self.weight_t_padded, self.bias_padded,
            out_features=self.output_size,
        )
        return out.reshape(*lead, self.output_size)


if __name__ == "__main__":
    key = jax.random.PRNGKey(0)
    k_in, k_model, k_big = jax.random.split(key, 3)

    # Shapes implied by the module's forward: (B, input_size) -> (B, output_size)
    batch, input_size, output_size = 8, 256, 128
    x = jax.random.normal(k_in, (batch, input_size), jnp.float32)

    enc = EncoderShowAndTellRevisePallas(input_size, output_size, k_model)
    out = jax.block_until_ready(enc(x))
    assert out.shape == (batch, output_size)

    # Reference uses the same bf16-rounded operands the kernel sees
    # (f32 accumulation), so the comparison isolates kernel correctness.
    w_bf = enc.weight_t_padded[:input_size, :output_size].astype(jnp.float32)
    x_bf = x.astype(jnp.bfloat16).astype(jnp.float32)
    ref = x_bf @ w_bf + enc.bias
    assert jnp.allclose(out, ref, atol=2e-2, rtol=2e-2)

    # Also exercise the general tiled f32 path (non tile-divisible shapes):
    # M=200->208, K=600->640, N=300->384; tiles divide the padded dims exactly.
    M2, K2, N2 = 200, 600, 300
    kx, kw2, kb2 = jax.random.split(k_big, 3)
    x2 = jax.random.normal(kx, (M2, K2), jnp.float32)
    w2 = jax.random.normal(kw2, (K2, N2), jnp.float32) * 0.05
    b2 = jax.random.normal(kb2, (N2,), jnp.float32)
    out2 = jax.block_until_ready(linear_pallas(x2, w2, b2, single_block=False))
    ref2 = x2 @ w2 + b2
    assert out2.shape == (M2, N2)
    assert jnp.allclose(out2, ref2, atol=2e-3, rtol=2e-3)

    print("KERNEL_OK")
</pallas_src>

<mosaic_0001>
module attributes {stable_mosaic.version = 11 : i64} {
  func.func @_linear_single_block_kernel(%arg0: memref<8x256xf32, #tpu.memory_space<vmem>>, %arg1: memref<256x128xbf16, #tpu.memory_space<vmem>>, %arg2: memref<1x128xf32, #tpu.memory_space<vmem>>, %arg3: memref<8x128xf32, #tpu.memory_space<vmem>>) attributes {dimension_semantics = [], scalar_prefetch = 0 : i64, scratch_operands = 0 : i64, tpu.core_type = #tpu.core_type<tc>} {
    %c0 = arith.constant 0 : index
    %c0_0 = arith.constant 0 : index
    %0 = vector.load %arg0[%c0, %c0_0] : memref<8x256xf32, #tpu.memory_space<vmem>>, vector<8x256xf32>
    %c0_1 = arith.constant 0 : index
    %c0_2 = arith.constant 0 : index
    %1 = vector.load %arg1[%c0_1, %c0_2] : memref<256x128xbf16, #tpu.memory_space<vmem>>, vector<256x128xbf16>
    %2 = arith.truncf %0 : vector<8x256xf32> to vector<8x256xbf16>
    %cst = arith.constant dense<0.000000e+00> : vector<8x128xf32>
    %3 = tpu.matmul %2, %1, %cst {dimension_numbers = #tpu.dot_dimension_numbers<[1], [0], [0], [1], [0, 0, 1, 1], [], []>} : vector<8x256xbf16>, vector<256x128xbf16>, vector<8x128xf32> -> vector<8x128xf32>
    %c0_3 = arith.constant 0 : index
    %c0_4 = arith.constant 0 : index
    %4 = vector.load %arg2[%c0_3, %c0_4] : memref<1x128xf32, #tpu.memory_space<vmem>>, vector<1x128xf32>
    %5 = vector.broadcast %4 : vector<1x128xf32> to vector<8x128xf32>
    %6 = arith.addf %3, %5 : vector<8x128xf32>
    %c0_5 = arith.constant 0 : index
    %c0_6 = arith.constant 0 : index
    %7 = vector.load %arg3[%c0_5, %c0_6] : memref<8x128xf32, #tpu.memory_space<vmem>>, vector<8x128xf32>
    tpu.vector_store %arg3[%c0_5, %c0_6], %6 {strides = array<i32>} : memref<8x128xf32, #tpu.memory_space<vmem>>, vector<8x128xf32>,
    return
  }
}

</mosaic_0001>

<llo_original>
// kernel: linear_pallas.1
$region0: #{linear_pallas.1}
  #allocation0 [shape = 'u32[]', space=smem, size = 0x4, offset = 0x4, fixed_abs, tag = 'smem constant byte address 0x4 - core index']
  #allocation1 [shape = 'u32[72,128]{1,0:T(1,128)}', space=vmem, size = 0x9000, scoped, tag = 'internal scratch']
  %s0 = inlined_call_operand.hbm [shape: f32[8,256], index: 0, kind: input, shape index: {}]
  %s1 = inlined_call_operand.hbm [shape: bf16[256,128], index: 1, kind: input, shape index: {}]
  %s2 = inlined_call_operand.vmem [shape: f32[1,128], index: 2, kind: input, shape index: {}]
  %s3 = inlined_call_operand.hbm [shape: f32[8,128], index: 3, kind: output, shape index: {}]
  %s4 = sld [smem:[#allocation0]]
  $region30: #{linear_pallas.1} parent=0
    _
  %s6 = ssub.s32 1, %s4
  %s7 = scalar_select 0, %s6, %s4
  $region1: #{linear_pallas.1} parent=0
    #allocation2 [shape = 'u8[8192]{0}', space=vmem, size = 0x2000, scoped, tag = 'input window, operand 0, single buffered']
    #allocation3 [shape = 's32[1]{0}', space=sflag, size = 0x4, scoped, tag = 'scoped memory for linear_pallas.1']
    #allocation4 [shape = 's32[1]{0}', space=sflag, size = 0x4, scoped, tag = 'scoped memory for linear_pallas.1']
    #allocation5 [shape = 'u8[65536]{0}', space=vmem, size = 0x10000, scoped, tag = 'input window, operand 1, single buffered']
    #allocation6 [shape = 's32[1]{0}', space=sflag, size = 0x4, scoped, tag = 'scoped memory for linear_pallas.1']
    #allocation7 [shape = 'u8[4096]{0}', space=vmem, size = 0x1000, scoped, tag = 'output window, operand 0, single buffered']
    %8 = vsyncpa [#allocation3], 0
    %9 = vsyncpa [#allocation6], 0
    %10 = vsyncpa [#allocation4], 0
    // Predicated region
    $region2: #{linear_pallas.1} parent=1 // pred_check
      _
    $region3: #{linear_pallas.1} parent=1 // pred_check_branch
      %12 = sbr.rel (0) target = $region5
    $region4: #{linear_pallas.1} parent=1 // pred_region
      %14 = vsyncadd [#allocation3], 0
      %s16 = sshll.u32 %s0, 4
      %s17 = int_to_ptr.hbm [resolvable:$true] %s16
      %s18 = sshll.u32 [#allocation2], 4
      %s19 = int_to_ptr.vmem [resolvable:$true] %s18
      %21 = dma.hbm_to_vmem [thread:$0]  %s17, 256, %s19, [#allocation3]
    $region5: #{linear_pallas.1} parent=1 // pred_fallthru
      _
    // Predicated region
    $region6: #{linear_pallas.1} parent=1 // pred_check
      _
    $region7: #{linear_pallas.1} parent=1 // pred_check_branch
      %23 = sbr.rel (0) target = $region9
    $region8: #{linear_pallas.1} parent=1 // pred_region
      %25 = vsyncadd [#allocation6], 0
      %s26 = sshll.u32 %s1, 4
      %s27 = int_to_ptr.hbm [resolvable:$true] %s26
      %s28 = sshll.u32 [#allocation5], 4
      %s29 = int_to_ptr.vmem [resolvable:$true] %s28
      %34 = dma.hbm_to_vmem [thread:$0]  %s27, 2048, %s29, [#allocation6], 64, 64, 4
    $region9: #{linear_pallas.1} parent=1 // pred_fallthru
      _
    // Predicated region
    $region10: #{linear_pallas.1} parent=1 // pred_check
      _
    $region11: #{linear_pallas.1} parent=1 // pred_check_branch
      %36 = sbr.rel (0) target = $region13
    $region12: #{linear_pallas.1} parent=1 // pred_region
      _
    $region13: #{linear_pallas.1} parent=1 // pred_fallthru
      _
    // Predicated region
    $region14: #{linear_pallas.1} parent=1 // pred_check
      _
    $region15: #{linear_pallas.1} parent=1 // pred_check_branch
      %38 = sbr.rel (0) target = $region17
    $region16: #{linear_pallas.1} parent=1 // pred_region
      %40 = dma.done [#allocation3], 256
    $region17: #{linear_pallas.1} parent=1 // pred_fallthru
      _
    // Predicated region
    $region18: #{linear_pallas.1} parent=1 // pred_check
      _
    $region19: #{linear_pallas.1} parent=1 // pred_check_branch
      %42 = sbr.rel (0) target = $region21
    $region20: #{linear_pallas.1} parent=1 // pred_region
      %44 = dma.done [#allocation6], 2048
    $region21: #{linear_pallas.1} parent=1 // pred_fallthru
      _
    %v45 = vld [vmem:[#allocation2] sm:$0xff]
    %v46 = vld [vmem:[#allocation2 + $0x8] sm:$0xff]
    %v47 = vld [vmem:[#allocation5] sm:$0xf]
    %v48 = vld [vmem:[#allocation5 + $0x4] sm:$0xf]
    %v49 = vld [vmem:[#allocation5 + $0x8] sm:$0xf]
    %v50 = vld [vmem:[#allocation5 + $0xc] sm:$0xf]
    %v51 = vld [vmem:[#allocation5 + $0x10] sm:$0xf]
    %v52 = vld [vmem:[#allocation5 + $0x14] sm:$0xf]
    %v53 = vld [vmem:[#allocation5 + $0x18] sm:$0xf]
    %v54 = vld [vmem:[#allocation5 + $0x1c] sm:$0xf]
    %v55 = vld [vmem:[#allocation5 + $0x20] sm:$0xf]
    %v56 = vld [vmem:[#allocation5 + $0x24] sm:$0xf]
    %v57 = vld [vmem:[#allocation5 + $0x28] sm:$0xf]
    %v58 = vld [vmem:[#allocation5 + $0x2c] sm:$0xf]
    %v59 = vld [vmem:[#allocation5 + $0x30] sm:$0xf]
    %v60 = vld [vmem:[#allocation5 + $0x34] sm:$0xf]
    %v61 = vld [vmem:[#allocation5 + $0x38] sm:$0xf]
    %v62 = vld [vmem:[#allocation5 + $0x3c] sm:$0xf]
    %v63 = vld [vmem:[#allocation5 + $0x40] sm:$0xf]
    %v64 = vld [vmem:[#allocation5 + $0x44] sm:$0xf]
    %v65 = vld [vmem:[#allocation5 + $0x48] sm:$0xf]
    %v66 = vld [vmem:[#allocation5 + $0x4c] sm:$0xf]
    %v67 = vld [vmem:[#allocation5 + $0x50] sm:$0xf]
    %v68 = vld [vmem:[#allocation5 + $0x54] sm:$0xf]
    %v69 = vld [vmem:[#allocation5 + $0x58] sm:$0xf]
    %v70 = vld [vmem:[#allocation5 + $0x5c] sm:$0xf]
    %v71 = vld [vmem:[#allocation5 + $0x60] sm:$0xf]
    %v72 = vld [vmem:[#allocation5 + $0x64] sm:$0xf]
    %v73 = vld [vmem:[#allocation5 + $0x68] sm:$0xf]
    %v74 = vld [vmem:[#allocation5 + $0x6c] sm:$0xf]
    %v75 = vld [vmem:[#allocation5 + $0x70] sm:$0xf]
    %v76 = vld [vmem:[#allocation5 + $0x74] sm:$0xf]
    %v77 = vld [vmem:[#allocation5 + $0x78] sm:$0xf]
    %v78 = vld [vmem:[#allocation5 + $0x7c] sm:$0xf]
    %v79 = vpack.c.bf16 %v45, %v45
    %v80 = vpack.c.bf16 %v46, %v46
    %v81 = vld [vmem:[%s2] sm:$0x1]
    %v83 = vperm.slane %v81, 0
    %v117 = vunpack.c.l.b16 %v47
    %v118 = vunpack.c.l.b16 %v48
    %v119 = vunpack.c.l.b16 %v49
    %v120 = vunpack.c.l.b16 %v50
    %v121 = vunpack.c.l.b16 %v51
    %v122 = vunpack.c.l.b16 %v52
    %v123 = vunpack.c.l.b16 %v53
    %v124 = vunpack.c.l.b16 %v54
    %v125 = vunpack.c.l.b16 %v55
    %v126 = vunpack.c.l.b16 %v56
    %v127 = vunpack.c.l.b16 %v57
    %v128 = vunpack.c.l.b16 %v58
    %v129 = vunpack.c.l.b16 %v59
    %v130 = vunpack.c.l.b16 %v60
    %v131 = vunpack.c.l.b16 %v61
    %v132 = vunpack.c.l.b16 %v62
    %v133 = vunpack.c.l.b16 %v63
    %v134 = vunpack.c.l.b16 %v64
    %v135 = vunpack.c.l.b16 %v65
    %v136 = vunpack.c.l.b16 %v66
    %v137 = vunpack.c.l.b16 %v67
    %v138 = vunpack.c.l.b16 %v68
    %v139 = vunpack.c.l.b16 %v69
    %v140 = vunpack.c.l.b16 %v70
    %v141 = vunpack.c.l.b16 %v71
    %v142 = vunpack.c.l.b16 %v72
    %v143 = vunpack.c.l.b16 %v73
    %v144 = vunpack.c.l.b16 %v74
    %v145 = vunpack.c.l.b16 %v75
    %v146 = vunpack.c.l.b16 %v76
    %v147 = vunpack.c.l.b16 %v77
    %v148 = vunpack.c.l.b16 %v78
    %v149 = vpack.c.b16 %v118, %v117
    %v150 = vpack.c.b16 %v120, %v119
    %v151 = vpack.c.b16 %v122, %v121
    %v152 = vpack.c.b16 %v124, %v123
    %v153 = vpack.c.b16 %v126, %v125
    %v154 = vpack.c.b16 %v128, %v127
    %v155 = vpack.c.b16 %v130, %v129
    %v156 = vpack.c.b16 %v132, %v131
    %v157 = vpack.c.b16 %v134, %v133
    %v158 = vpack.c.b16 %v136, %v135
    %v159 = vpack.c.b16 %v138, %v137
    %v160 = vpack.c.b16 %v140, %v139
    %v161 = vpack.c.b16 %v142, %v141
    %v162 = vpack.c.b16 %v144, %v143
    %v163 = vpack.c.b16 %v146, %v145
    %v164 = vpack.c.b16 %v148, %v147
    %181 = vmatpush.bf16.msra.mxu0 %v156
    %182 = vmatpush.bf16.msra.mxu0 %v155
    %183 = vmatpush.bf16.msra.mxu0 %v154
    %184 = vmatpush.bf16.msra.mxu0 %v153
    %185 = vmatpush.bf16.msra.mxu0 %v152
    %186 = vmatpush.bf16.msra.mxu0 %v151
    %187 = vmatpush.bf16.msra.mxu0 %v150
    %188 = vmatpush.bf16.msra.mxu0 %v149
    %189 = vmatmul.bf16.gmra.mxu0 %v79
    %v190 = vpop.f32.mrf.mxu0
    %v191 = vadd.f32 %v83, %v190
    %v192 = vpop.f32.mrf.mxu0
    %193 = vdwg.mxu0
    %194 = vmatpush.bf16.msra.mxu0 %v164
    %195 = vmatpush.bf16.msra.mxu0 %v163
    %196 = vmatpush.bf16.msra.mxu0 %v162
    %197 = vmatpush.bf16.msra.mxu0 %v161
    %198 = vmatpush.bf16.msra.mxu0 %v160
    %199 = vmatpush.bf16.msra.mxu0 %v159
    %200 = vmatpush.bf16.msra.mxu0 %v158
    %201 = vmatpush.bf16.msra.mxu0 %v157
    %202 = vmatmul.bf16.gmra.mxu0 %v80
    %v203 = vpop.f32.mrf.mxu0
    %v204 = vadd.f32 %v191, %v203
    %v205 = vpop.f32.mrf.mxu0
    %206 = vdwg.mxu0
    %207 = vst [vmem:[#allocation7] sm:$0xff] %v204
    // Predicated region
    $region22: #{linear_pallas.1} parent=1 // pred_check
      _
    $region23: #{linear_pallas.1} parent=1 // pred_check_branch
      %209 = sbr.rel (0) target = $region25
    $region24: #{linear_pallas.1} parent=1 // pred_region
      %211 = vsyncadd [#allocation4], 0
      %s213 = sshll.u32 [#allocation7], 4
      %s214 = int_to_ptr.vmem [resolvable:$true] %s213
      %s215 = sshll.u32 %s3, 4
      %s216 = int_to_ptr.hbm [resolvable:$true] %s215
      %218 = dma.vmem_to_hbm [thread:$0]  %s214, 128, %s216, [#allocation4]
    $region25: #{linear_pallas.1} parent=1 // pred_fallthru
      _
    // Predicated region
    $region26: #{linear_pallas.1} parent=1 // pred_check
      _
    $region27: #{linear_pallas.1} parent=1 // pred_check_branch
      %220 = sbr.rel (0) target = $region29
    $region28: #{linear_pallas.1} parent=1 // pred_region
      %222 = dma.done [#allocation4], 128
    $region29: #{linear_pallas.1} parent=1 // pred_fallthru
      _
    %223 = vsyncpa [#allocation3], 1
    %224 = vsyncpa [#allocation6], 1
    %225 = vsyncpa [#allocation4], 1

</llo_original>
